<compile_context>
chip_gen: v5e
topology: v5e:2x2
jax: 0.10.0
libtpu: 0.0.40
codegen_flags: <defaults>
</compile_context>

<pallas_src>
import functools
import math

import jax
import jax.numpy as jnp
from jax.experimental import pallas as pl
from jax.experimental.pallas import tpu as pltpu

EPS = 1e-5
NUM_HEADS = 4


def _layernorm(x, gamma, beta):
    mu = jnp.mean(x, axis=-1, keepdims=True)
    var = jnp.mean((x - mu) * (x - mu), axis=-1, keepdims=True)
    return (x - mu) * jax.lax.rsqrt(var + EPS) * gamma + beta


def dit_block_kernel(x_ref,
                     g1_ref, b1_ref,
                     wqkv_ref, bqkv_ref,
                     wo_ref, bo_ref,
                     g2_ref, b2_ref,
                     wl_ref, bl_ref,
                     o_ref,
                     *, num_heads, seq_len):
    R, D = x_ref.shape
    Bt = R // seq_len
    hd = D // num_heads

    x = x_ref[...]                                                   # (R, D)

    # ---- LayerNorm 1 --------------------------------------------------------
    h1 = _layernorm(x, g1_ref[...], b1_ref[...])                     # (R, D)

    # ---- fused QKV projection -----------------------------------------------
    # wqkv columns are head-major ([q_h | k_h | v_h] per head) and the softmax
    # scale is already folded into the Q columns (done once at param prep).
    qkv = jnp.dot(h1, wqkv_ref[...],
                  preferred_element_type=jnp.float32) + bqkv_ref[...]    # (R, 3D)
    qkv3 = qkv.reshape(Bt, seq_len, 3 * D)       # leading-dim split only (free)

    # ---- attention with Wo folded into the per-head loop ----------------------
    # acc accumulates: residual x + out-proj bias + sum_h ctx_h @ Wo[h rows].
    acc = x + bo_ref[...]                                            # (R, D)
    for h in range(num_heads):
        grp = qkv3[:, :, h * 3 * hd:(h + 1) * 3 * hd]                # (Bt, S, 3*hd)
        qh = grp[:, :, 0 * hd:1 * hd]            # scale pre-folded into weights
        kh = grp[:, :, 1 * hd:2 * hd]
        vh = grp[:, :, 2 * hd:3 * hd]
        s = jnp.einsum('bqd,bkd->bqk', qh, kh,
                       preferred_element_type=jnp.float32)           # (Bt, S, S)
        s = s - jnp.max(s, axis=-1, keepdims=True)
        p = jnp.exp(s)
        p = p * pl.reciprocal(jnp.sum(p, axis=-1, keepdims=True), approx=True)
        ctx_h = jnp.einsum('bqk,bkd->bqd', p, vh,
                           preferred_element_type=jnp.float32)       # (Bt, S, hd)
        # Fold the output projection: sublane-aligned row slice of Wo, small MXU
        # accumulation (rides the vex slot) instead of masked lane-offset stores
        # to a VMEM scratch + readback.
        acc = acc + jnp.dot(ctx_h.reshape(R, hd),
                            wo_ref[h * hd:(h + 1) * hd, :],
                            preferred_element_type=jnp.float32)

    x1 = acc                                      # = x + MHA(LN1(x))

    # ---- LayerNorm 2 + Linear + residual 2 ------------------------------------
    h2 = _layernorm(x1, g2_ref[...], b2_ref[...])
    y = jnp.dot(h2, wl_ref[...], preferred_element_type=jnp.float32) + bl_ref[...]
    o_ref[...] = (y + x1).astype(o_ref.dtype)


def prepare_params(raw_params, num_heads=NUM_HEADS):
    """One-time weight transform (call once, not per forward pass):
       * transpose PyTorch-convention (out, in) weights,
       * fuse q/k/v projections into a single (D, 3D) matmul,
       * fold the 1/sqrt(head_dim) softmax scale into the Q columns,
       * reorder fused columns head-major so per-head extraction in the kernel
         is one contiguous lane-group slice."""
    (g1, b1, in_w, in_b, out_w, out_b, g2, b2, lin_w, lin_b) = raw_params
    D = g1.shape[-1]
    hd = D // num_heads
    scale = 1.0 / math.sqrt(hd)

    wqkv = in_w.T.astype(jnp.float32)                  # (D, 3D) = [Q | K | V]
    bqkv = in_b.reshape(1, 3 * D).astype(jnp.float32)
    col_scale = jnp.concatenate([jnp.full((D,), scale, jnp.float32),
                                 jnp.ones((2 * D,), jnp.float32)])
    wqkv = wqkv * col_scale
    bqkv = bqkv * col_scale

    perm = []
    for h in range(num_heads):
        for part in range(3):                          # q, k, v for this head
            base = part * D + h * hd
            perm.extend(range(base, base + hd))
    perm = jnp.asarray(perm, dtype=jnp.int32)
    wqkv = wqkv[:, perm]
    bqkv = bqkv[:, perm]

    return (g1.reshape(1, D), b1.reshape(1, D),
            wqkv, bqkv,
            out_w.T.astype(jnp.float32), out_b.reshape(1, D).astype(jnp.float32),
            g2.reshape(1, D), b2.reshape(1, D),
            lin_w.T.astype(jnp.float32), lin_b.reshape(1, D).astype(jnp.float32))


def dit_block(x, params, *, num_heads=NUM_HEADS, row_blocks=1):
    """row_blocks=1 (default): single grid step, everything resident — best at this
    size on v5e/v6e/v7x.  Only raise row_blocks (the 'parallel' grid axis) on v7x
    once B*S/row_blocks >= ~256 rows per core; below that the duplicated weight DMA
    and fixed per-core overhead outweigh the halved compute."""
    B, S, D = x.shape
    R = B * S
    assert R % row_blocks == 0
    rows = R // row_blocks
    assert rows % S == 0, "a row block must hold whole sequences"

    (g1, b1, wqkv, bqkv, wo, bo, g2, b2, wl, bl) = params

    x2 = x.reshape(R, D)        # free reshape of a contiguous HBM array

    # Constant index maps -> weights stay resident in VMEM across grid steps.
    const = lambda shape: pl.BlockSpec(shape, lambda i: (0, 0))
    kernel = functools.partial(dit_block_kernel, num_heads=num_heads, seq_len=S)

    # TODO(synk): at real DiT dims (D>=768, S>=1024) add a row grid axis with
    # 256-512-row tiles, bf16 MXU operands (f32 accumulate), flash-style KV
    # streaming, pl.Buffered(1) on the constant weight specs, and an explicit
    # vmem_limit_bytes (v7x has 64 MiB VMEM vs 128 MiB on v5e/v6e).
    out2 = pl.pallas_call(
        kernel,
        out_shape=jax.ShapeDtypeStruct((R, D), x.dtype),
        grid_spec=pltpu.PrefetchScalarGridSpec(
            num_scalar_prefetch=0,
            grid=(row_blocks,),
            in_specs=[
                pl.BlockSpec((rows, D), lambda i: (i, 0)),   # x (batch folded into rows)
                const((1, D)), const((1, D)),                # ln1 gamma/beta
                const((D, 3 * D)), const((1, 3 * D)),        # fused Wqkv^T (head-major, scaled), bqkv
                const((D, D)), const((1, D)),                # Wo^T, bo
                const((1, D)), const((1, D)),                # ln2 gamma/beta
                const((D, D)), const((1, D)),                # Wl^T, bl
            ],
            out_specs=pl.BlockSpec((rows, D), lambda i: (i, 0)),
        ),
        compiler_params=pltpu.CompilerParams(
            dimension_semantics=("parallel",)),
    )(x2, g1, b1, wqkv, bqkv, wo, bo, g2, b2, wl, bl)

    return out2.reshape(B, S, D)


# ---------------------------------------------------------------------------
# Pure-JAX reference (mirrors PyTorch semantics, raw PyTorch-convention params).
# ---------------------------------------------------------------------------
def dit_block_ref(x, raw_params, num_heads=NUM_HEADS):
    (g1, b1, in_w, in_b, out_w, out_b, g2, b2, lin_w, lin_b) = raw_params
    B, S, D = x.shape
    hd = D // num_heads

    def ln(t, g, b):
        mu = jnp.mean(t, axis=-1, keepdims=True)
        var = jnp.mean((t - mu) ** 2, axis=-1, keepdims=True)
        return (t - mu) / jnp.sqrt(var + EPS) * g + b

    h1 = ln(x, g1, b1)
    qkv = h1 @ in_w.T + in_b
    q, k, v = qkv[..., :D], qkv[..., D:2 * D], qkv[..., 2 * D:]
    qh = q.reshape(B, S, num_heads, hd).transpose(0, 2, 1, 3)
    kh = k.reshape(B, S, num_heads, hd).transpose(0, 2, 1, 3)
    vh = v.reshape(B, S, num_heads, hd).transpose(0, 2, 1, 3)
    s = jnp.einsum("bhqd,bhkd->bhqk", qh, kh) / math.sqrt(hd)
    p = jax.nn.softmax(s, axis=-1)
    ctx = jnp.einsum("bhqk,bhkd->bhqd", p, vh).transpose(0, 2, 1, 3).reshape(B, S, D)
    x1 = ctx @ out_w.T + out_b + x
    h2 = ln(x1, g2, b2)
    return h2 @ lin_w.T + lin_b + x1


if __name__ == "__main__":
    B, S, D = 2, 8, 32
    key = jax.random.PRNGKey(0)
    ks = jax.random.split(key, 11)

    x = jax.random.normal(ks[0], (B, S, D), dtype=jnp.float32)

    # Deterministic synthetic parameters (same shapes as the PyTorch module).
    g1 = jnp.ones((D,), jnp.float32) + 0.01 * jax.random.normal(ks[1], (D,))
    b1 = 0.01 * jax.random.normal(ks[2], (D,))
    g2 = jnp.ones((D,), jnp.float32) + 0.01 * jax.random.normal(ks[3], (D,))
    b2 = 0.01 * jax.random.normal(ks[4], (D,))
    # nn.MultiheadAttention: in_proj (3D, D) + bias (3D,), out_proj (D, D) + bias (D,)
    in_proj_w = 0.1 * jax.random.normal(ks[5], (3 * D, D), dtype=jnp.float32)
    in_proj_b = 0.1 * jax.random.normal(ks[6], (3 * D,), dtype=jnp.float32)
    out_proj_w = 0.1 * jax.random.normal(ks[7], (D, D), dtype=jnp.float32)
    out_proj_b = 0.01 * jax.random.normal(ks[9], (D,), dtype=jnp.float32)
    # nn.Linear(D, D)
    lin_w = 0.1 * jax.random.normal(ks[8], (D, D), dtype=jnp.float32)
    lin_b = 0.01 * jax.random.normal(ks[10], (D,), dtype=jnp.float32)

    raw_params = (g1, b1, in_proj_w, in_proj_b, out_proj_w, out_proj_b,
                  g2, b2, lin_w, lin_b)
    params = prepare_params(raw_params)          # one-time weight transform

    out = jax.block_until_ready(dit_block(x, params))
    ref = dit_block_ref(x, raw_params)

    assert out.shape == (B, S, D)
    err = float(jnp.max(jnp.abs(out - ref)))
    # Tolerance loosened slightly vs. exact reciprocal because the softmax
    # denominator uses the approximate EUP reciprocal.
    assert err < 2e-3, f"mismatch vs reference: max abs err = {err}"
    print("KERNEL_OK")
</pallas_src>

<mosaic_0001>
module attributes {stable_mosaic.version = 11 : i64} {
  func.func @dit_block_kernel(%arg0: i32, %arg1: memref<16x32xf32, #tpu.memory_space<vmem>>, %arg2: memref<1x32xf32, #tpu.memory_space<vmem>>, %arg3: memref<1x32xf32, #tpu.memory_space<vmem>>, %arg4: memref<32x96xf32, #tpu.memory_space<vmem>>, %arg5: memref<1x96xf32, #tpu.memory_space<vmem>>, %arg6: memref<32x32xf32, #tpu.memory_space<vmem>>, %arg7: memref<1x32xf32, #tpu.memory_space<vmem>>, %arg8: memref<1x32xf32, #tpu.memory_space<vmem>>, %arg9: memref<1x32xf32, #tpu.memory_space<vmem>>, %arg10: memref<32x32xf32, #tpu.memory_space<vmem>>, %arg11: memref<1x32xf32, #tpu.memory_space<vmem>>, %arg12: memref<16x32xf32, #tpu.memory_space<vmem>>) attributes {dimension_semantics = [#tpu.dimension_semantics<parallel>], iteration_bounds = array<i64: 1>, scalar_prefetch = 0 : i64, scratch_operands = 0 : i64, tpu.core_type = #tpu.core_type<tc>, window_params = [{transform_indices = @transform_0, window_bounds = array<i64: 16, 32>}, {pipeline_mode = #tpu.pipeline_mode<synchronous>, transform_indices = @transform_1, window_bounds = array<i64: 1, 32>}, {pipeline_mode = #tpu.pipeline_mode<synchronous>, transform_indices = @transform_2, window_bounds = array<i64: 1, 32>}, {pipeline_mode = #tpu.pipeline_mode<synchronous>, transform_indices = @transform_3, window_bounds = array<i64: 32, 96>}, {pipeline_mode = #tpu.pipeline_mode<synchronous>, transform_indices = @transform_4, window_bounds = array<i64: 1, 96>}, {pipeline_mode = #tpu.pipeline_mode<synchronous>, transform_indices = @transform_5, window_bounds = array<i64: 32, 32>}, {pipeline_mode = #tpu.pipeline_mode<synchronous>, transform_indices = @transform_6, window_bounds = array<i64: 1, 32>}, {pipeline_mode = #tpu.pipeline_mode<synchronous>, transform_indices = @transform_7, window_bounds = array<i64: 1, 32>}, {pipeline_mode = #tpu.pipeline_mode<synchronous>, transform_indices = @transform_8, window_bounds = array<i64: 1, 32>}, {pipeline_mode = #tpu.pipeline_mode<synchronous>, transform_indices = @transform_9, window_bounds = array<i64: 32, 32>}, {pipeline_mode = #tpu.pipeline_mode<synchronous>, transform_indices = @transform_10, window_bounds = array<i64: 1, 32>}, {transform_indices = @transform_11, window_bounds = array<i64: 16, 32>}]} {
    %c0 = arith.constant 0 : index
    %c0_0 = arith.constant 0 : index
    %0 = vector.load %arg1[%c0, %c0_0] : memref<16x32xf32, #tpu.memory_space<vmem>>, vector<16x32xf32>
    %c0_1 = arith.constant 0 : index
    %c0_2 = arith.constant 0 : index
    %1 = vector.load %arg2[%c0_1, %c0_2] : memref<1x32xf32, #tpu.memory_space<vmem>>, vector<1x32xf32>
    %c0_3 = arith.constant 0 : index
    %c0_4 = arith.constant 0 : index
    %2 = vector.load %arg3[%c0_3, %c0_4] : memref<1x32xf32, #tpu.memory_space<vmem>>, vector<1x32xf32>
    %cst = arith.constant dense<0.000000e+00> : vector<16xf32>
    %3 = vector.multi_reduction <add>, %0, %cst [1] : vector<16x32xf32> to vector<16xf32>
    %4 = vector.shape_cast %3 : vector<16xf32> to vector<16x1xf32>
    %cst_5 = arith.constant 3.200000e+01 : f32
    %5 = vector.broadcast %cst_5 : f32 to vector<16x1xf32>
    %6 = arith.divf %4, %5 : vector<16x1xf32>
    %7 = vector.broadcast %6 : vector<16x1xf32> to vector<16x32xf32>
    %8 = arith.subf %0, %7 : vector<16x32xf32>
    %9 = vector.broadcast %6 : vector<16x1xf32> to vector<16x32xf32>
    %10 = arith.subf %0, %9 : vector<16x32xf32>
    %11 = arith.mulf %8, %10 : vector<16x32xf32>
    %cst_6 = arith.constant dense<0.000000e+00> : vector<16xf32>
    %12 = vector.multi_reduction <add>, %11, %cst_6 [1] : vector<16x32xf32> to vector<16xf32>
    %13 = vector.shape_cast %12 : vector<16xf32> to vector<16x1xf32>
    %cst_7 = arith.constant 3.200000e+01 : f32
    %14 = vector.broadcast %cst_7 : f32 to vector<16x1xf32>
    %15 = arith.divf %13, %14 : vector<16x1xf32>
    %16 = vector.broadcast %6 : vector<16x1xf32> to vector<16x32xf32>
    %17 = arith.subf %0, %16 : vector<16x32xf32>
    %cst_8 = arith.constant 9.99999974E-6 : f32
    %18 = vector.broadcast %cst_8 : f32 to vector<16x1xf32>
    %19 = arith.addf %15, %18 : vector<16x1xf32>
    %20 = math.rsqrt %19 : vector<16x1xf32>
    %21 = vector.broadcast %20 : vector<16x1xf32> to vector<16x32xf32>
    %22 = arith.mulf %17, %21 : vector<16x32xf32>
    %23 = vector.broadcast %1 : vector<1x32xf32> to vector<16x32xf32>
    %24 = arith.mulf %22, %23 : vector<16x32xf32>
    %25 = vector.broadcast %2 : vector<1x32xf32> to vector<16x32xf32>
    %26 = arith.addf %24, %25 : vector<16x32xf32>
    %c0_9 = arith.constant 0 : index
    %c0_10 = arith.constant 0 : index
    %27 = vector.load %arg4[%c0_9, %c0_10] : memref<32x96xf32, #tpu.memory_space<vmem>>, vector<32x96xf32>
    %cst_11 = arith.constant dense<0.000000e+00> : vector<16x96xf32>
    %28 = tpu.matmul %26, %27, %cst_11 {dimension_numbers = #tpu.dot_dimension_numbers<[1], [0], [0], [1], [0, 0, 1, 1], [], []>} : vector<16x32xf32>, vector<32x96xf32>, vector<16x96xf32> -> vector<16x96xf32>
    %c0_12 = arith.constant 0 : index
    %c0_13 = arith.constant 0 : index
    %29 = vector.load %arg5[%c0_12, %c0_13] : memref<1x96xf32, #tpu.memory_space<vmem>>, vector<1x96xf32>
    %30 = vector.broadcast %29 : vector<1x96xf32> to vector<16x96xf32>
    %31 = arith.addf %28, %30 : vector<16x96xf32>
    %32 = vector.shape_cast %31 : vector<16x96xf32> to vector<2x8x96xf32>
    %c0_14 = arith.constant 0 : index
    %c0_15 = arith.constant 0 : index
    %33 = vector.load %arg7[%c0_14, %c0_15] : memref<1x32xf32, #tpu.memory_space<vmem>>, vector<1x32xf32>
    %34 = vector.broadcast %33 : vector<1x32xf32> to vector<16x32xf32>
    %35 = arith.addf %0, %34 : vector<16x32xf32>
    %36 = vector.extract_strided_slice %32 {offsets = [0, 0, 0], sizes = [2, 8, 24], strides = [1, 1, 1]} : vector<2x8x96xf32> to vector<2x8x24xf32>
    %37 = vector.extract_strided_slice %36 {offsets = [0, 0, 0], sizes = [2, 8, 8], strides = [1, 1, 1]} : vector<2x8x24xf32> to vector<2x8x8xf32>
    %38 = vector.extract_strided_slice %36 {offsets = [0, 0, 8], sizes = [2, 8, 8], strides = [1, 1, 1]} : vector<2x8x24xf32> to vector<2x8x8xf32>
    %39 = vector.extract_strided_slice %36 {offsets = [0, 0, 16], sizes = [2, 8, 8], strides = [1, 1, 1]} : vector<2x8x24xf32> to vector<2x8x8xf32>
    "tpu.trace_start"() <{level = 10 : i32, message = "bqd,bkd->bqk"}> : () -> ()
    %cst_16 = arith.constant dense<0.000000e+00> : vector<2x8x8xf32>
    %40 = tpu.matmul %37, %38, %cst_16 {dimension_numbers = #tpu.dot_dimension_numbers<[2], [2], [1], [1], [0, 0, 0, 1, 1, 1], [0], [0]>} : vector<2x8x8xf32>, vector<2x8x8xf32>, vector<2x8x8xf32> -> vector<2x8x8xf32>
    "tpu.trace_stop"() : () -> ()
    %cst_17 = arith.constant dense<0xFF800000> : vector<2x8xf32>
    %41 = vector.multi_reduction <maximumf>, %40, %cst_17 [2] : vector<2x8x8xf32> to vector<2x8xf32>
    %42 = vector.shape_cast %41 : vector<2x8xf32> to vector<2x8x1xf32>
    %43 = vector.broadcast %42 : vector<2x8x1xf32> to vector<2x8x8xf32>
    %44 = arith.subf %40, %43 : vector<2x8x8xf32>
    %45 = math.exp %44 : vector<2x8x8xf32>
    %cst_18 = arith.constant dense<0.000000e+00> : vector<2x8xf32>
    %46 = vector.multi_reduction <add>, %45, %cst_18 [2] : vector<2x8x8xf32> to vector<2x8xf32>
    %47 = vector.shape_cast %46 : vector<2x8xf32> to vector<2x8x1xf32>
    %48 = tpu.reciprocal %47 {approx = true} : vector<2x8x1xf32> -> vector<2x8x1xf32>
    %49 = vector.broadcast %48 : vector<2x8x1xf32> to vector<2x8x8xf32>
    %50 = arith.mulf %45, %49 : vector<2x8x8xf32>
    "tpu.trace_start"() <{level = 10 : i32, message = "bqk,bkd->bqd"}> : () -> ()
    %cst_19 = arith.constant dense<0.000000e+00> : vector<2x8x8xf32>
    %51 = tpu.matmul %50, %39, %cst_19 {dimension_numbers = #tpu.dot_dimension_numbers<[2], [1], [1], [2], [0, 0, 0, 1, 1, 2], [0], [0]>} : vector<2x8x8xf32>, vector<2x8x8xf32>, vector<2x8x8xf32> -> vector<2x8x8xf32>
    "tpu.trace_stop"() : () -> ()
    %52 = vector.shape_cast %51 : vector<2x8x8xf32> to vector<16x8xf32>
    %c0_20 = arith.constant 0 : index
    %c0_21 = arith.constant 0 : index
    %53 = vector.load %arg6[%c0_20, %c0_21] : memref<32x32xf32, #tpu.memory_space<vmem>>, vector<8x32xf32>
    %cst_22 = arith.constant dense<0.000000e+00> : vector<16x32xf32>
    %54 = tpu.matmul %52, %53, %cst_22 {dimension_numbers = #tpu.dot_dimension_numbers<[1], [0], [0], [1], [0, 0, 1, 1], [], []>} : vector<16x8xf32>, vector<8x32xf32>, vector<16x32xf32> -> vector<16x32xf32>
    %55 = arith.addf %35, %54 : vector<16x32xf32>
    %56 = vector.extract_strided_slice %32 {offsets = [0, 0, 24], sizes = [2, 8, 24], strides = [1, 1, 1]} : vector<2x8x96xf32> to vector<2x8x24xf32>
    %57 = vector.extract_strided_slice %56 {offsets = [0, 0, 0], sizes = [2, 8, 8], strides = [1, 1, 1]} : vector<2x8x24xf32> to vector<2x8x8xf32>
    %58 = vector.extract_strided_slice %56 {offsets = [0, 0, 8], sizes = [2, 8, 8], strides = [1, 1, 1]} : vector<2x8x24xf32> to vector<2x8x8xf32>
    %59 = vector.extract_strided_slice %56 {offsets = [0, 0, 16], sizes = [2, 8, 8], strides = [1, 1, 1]} : vector<2x8x24xf32> to vector<2x8x8xf32>
    "tpu.trace_start"() <{level = 10 : i32, message = "bqd,bkd->bqk"}> : () -> ()
    %cst_23 = arith.constant dense<0.000000e+00> : vector<2x8x8xf32>
    %60 = tpu.matmul %57, %58, %cst_23 {dimension_numbers = #tpu.dot_dimension_numbers<[2], [2], [1], [1], [0, 0, 0, 1, 1, 1], [0], [0]>} : vector<2x8x8xf32>, vector<2x8x8xf32>, vector<2x8x8xf32> -> vector<2x8x8xf32>
    "tpu.trace_stop"() : () -> ()
    %cst_24 = arith.constant dense<0xFF800000> : vector<2x8xf32>
    %61 = vector.multi_reduction <maximumf>, %60, %cst_24 [2] : vector<2x8x8xf32> to vector<2x8xf32>
    %62 = vector.shape_cast %61 : vector<2x8xf32> to vector<2x8x1xf32>
    %63 = vector.broadcast %62 : vector<2x8x1xf32> to vector<2x8x8xf32>
    %64 = arith.subf %60, %63 : vector<2x8x8xf32>
    %65 = math.exp %64 : vector<2x8x8xf32>
    %cst_25 = arith.constant dense<0.000000e+00> : vector<2x8xf32>
    %66 = vector.multi_reduction <add>, %65, %cst_25 [2] : vector<2x8x8xf32> to vector<2x8xf32>
    %67 = vector.shape_cast %66 : vector<2x8xf32> to vector<2x8x1xf32>
    %68 = tpu.reciprocal %67 {approx = true} : vector<2x8x1xf32> -> vector<2x8x1xf32>
    %69 = vector.broadcast %68 : vector<2x8x1xf32> to vector<2x8x8xf32>
    %70 = arith.mulf %65, %69 : vector<2x8x8xf32>
    "tpu.trace_start"() <{level = 10 : i32, message = "bqk,bkd->bqd"}> : () -> ()
    %cst_26 = arith.constant dense<0.000000e+00> : vector<2x8x8xf32>
    %71 = tpu.matmul %70, %59, %cst_26 {dimension_numbers = #tpu.dot_dimension_numbers<[2], [1], [1], [2], [0, 0, 0, 1, 1, 2], [0], [0]>} : vector<2x8x8xf32>, vector<2x8x8xf32>, vector<2x8x8xf32> -> vector<2x8x8xf32>
    "tpu.trace_stop"() : () -> ()
    %72 = vector.shape_cast %71 : vector<2x8x8xf32> to vector<16x8xf32>
    %c8 = arith.constant 8 : index
    %c0_27 = arith.constant 0 : index
    %73 = vector.load %arg6[%c8, %c0_27] : memref<32x32xf32, #tpu.memory_space<vmem>>, vector<8x32xf32>
    %cst_28 = arith.constant dense<0.000000e+00> : vector<16x32xf32>
    %74 = tpu.matmul %72, %73, %cst_28 {dimension_numbers = #tpu.dot_dimension_numbers<[1], [0], [0], [1], [0, 0, 1, 1], [], []>} : vector<16x8xf32>, vector<8x32xf32>, vector<16x32xf32> -> vector<16x32xf32>
    %75 = arith.addf %55, %74 : vector<16x32xf32>
    %76 = vector.extract_strided_slice %32 {offsets = [0, 0, 48], sizes = [2, 8, 24], strides = [1, 1, 1]} : vector<2x8x96xf32> to vector<2x8x24xf32>
    %77 = vector.extract_strided_slice %76 {offsets = [0, 0, 0], sizes = [2, 8, 8], strides = [1, 1, 1]} : vector<2x8x24xf32> to vector<2x8x8xf32>
    %78 = vector.extract_strided_slice %76 {offsets = [0, 0, 8], sizes = [2, 8, 8], strides = [1, 1, 1]} : vector<2x8x24xf32> to vector<2x8x8xf32>
    %79 = vector.extract_strided_slice %76 {offsets = [0, 0, 16], sizes = [2, 8, 8], strides = [1, 1, 1]} : vector<2x8x24xf32> to vector<2x8x8xf32>
    "tpu.trace_start"() <{level = 10 : i32, message = "bqd,bkd->bqk"}> : () -> ()
    %cst_29 = arith.constant dense<0.000000e+00> : vector<2x8x8xf32>
    %80 = tpu.matmul %77, %78, %cst_29 {dimension_numbers = #tpu.dot_dimension_numbers<[2], [2], [1], [1], [0, 0, 0, 1, 1, 1], [0], [0]>} : vector<2x8x8xf32>, vector<2x8x8xf32>, vector<2x8x8xf32> -> vector<2x8x8xf32>
    "tpu.trace_stop"() : () -> ()
    %cst_30 = arith.constant dense<0xFF800000> : vector<2x8xf32>
    %81 = vector.multi_reduction <maximumf>, %80, %cst_30 [2] : vector<2x8x8xf32> to vector<2x8xf32>
    %82 = vector.shape_cast %81 : vector<2x8xf32> to vector<2x8x1xf32>
    %83 = vector.broadcast %82 : vector<2x8x1xf32> to vector<2x8x8xf32>
    %84 = arith.subf %80, %83 : vector<2x8x8xf32>
    %85 = math.exp %84 : vector<2x8x8xf32>
    %cst_31 = arith.constant dense<0.000000e+00> : vector<2x8xf32>
    %86 = vector.multi_reduction <add>, %85, %cst_31 [2] : vector<2x8x8xf32> to vector<2x8xf32>
    %87 = vector.shape_cast %86 : vector<2x8xf32> to vector<2x8x1xf32>
    %88 = tpu.reciprocal %87 {approx = true} : vector<2x8x1xf32> -> vector<2x8x1xf32>
    %89 = vector.broadcast %88 : vector<2x8x1xf32> to vector<2x8x8xf32>
    %90 = arith.mulf %85, %89 : vector<2x8x8xf32>
    "tpu.trace_start"() <{level = 10 : i32, message = "bqk,bkd->bqd"}> : () -> ()
    %cst_32 = arith.constant dense<0.000000e+00> : vector<2x8x8xf32>
    %91 = tpu.matmul %90, %79, %cst_32 {dimension_numbers = #tpu.dot_dimension_numbers<[2], [1], [1], [2], [0, 0, 0, 1, 1, 2], [0], [0]>} : vector<2x8x8xf32>, vector<2x8x8xf32>, vector<2x8x8xf32> -> vector<2x8x8xf32>
    "tpu.trace_stop"() : () -> ()
    %92 = vector.shape_cast %91 : vector<2x8x8xf32> to vector<16x8xf32>
    %c16 = arith.constant 16 : index
    %c0_33 = arith.constant 0 : index
    %93 = vector.load %arg6[%c16, %c0_33] : memref<32x32xf32, #tpu.memory_space<vmem>>, vector<8x32xf32>
    %cst_34 = arith.constant dense<0.000000e+00> : vector<16x32xf32>
    %94 = tpu.matmul %92, %93, %cst_34 {dimension_numbers = #tpu.dot_dimension_numbers<[1], [0], [0], [1], [0, 0, 1, 1], [], []>} : vector<16x8xf32>, vector<8x32xf32>, vector<16x32xf32> -> vector<16x32xf32>
    %95 = arith.addf %75, %94 : vector<16x32xf32>
    %96 = vector.extract_strided_slice %32 {offsets = [0, 0, 72], sizes = [2, 8, 24], strides = [1, 1, 1]} : vector<2x8x96xf32> to vector<2x8x24xf32>
    %97 = vector.extract_strided_slice %96 {offsets = [0, 0, 0], sizes = [2, 8, 8], strides = [1, 1, 1]} : vector<2x8x24xf32> to vector<2x8x8xf32>
    %98 = vector.extract_strided_slice %96 {offsets = [0, 0, 8], sizes = [2, 8, 8], strides = [1, 1, 1]} : vector<2x8x24xf32> to vector<2x8x8xf32>
    %99 = vector.extract_strided_slice %96 {offsets = [0, 0, 16], sizes = [2, 8, 8], strides = [1, 1, 1]} : vector<2x8x24xf32> to vector<2x8x8xf32>
    "tpu.trace_start"() <{level = 10 : i32, message = "bqd,bkd->bqk"}> : () -> ()
    %cst_35 = arith.constant dense<0.000000e+00> : vector<2x8x8xf32>
    %100 = tpu.matmul %97, %98, %cst_35 {dimension_numbers = #tpu.dot_dimension_numbers<[2], [2], [1], [1], [0, 0, 0, 1, 1, 1], [0], [0]>} : vector<2x8x8xf32>, vector<2x8x8xf32>, vector<2x8x8xf32> -> vector<2x8x8xf32>
    "tpu.trace_stop"() : () -> ()
    %cst_36 = arith.constant dense<0xFF800000> : vector<2x8xf32>
    %101 = vector.multi_reduction <maximumf>, %100, %cst_36 [2] : vector<2x8x8xf32> to vector<2x8xf32>
    %102 = vector.shape_cast %101 : vector<2x8xf32> to vector<2x8x1xf32>
    %103 = vector.broadcast %102 : vector<2x8x1xf32> to vector<2x8x8xf32>
    %104 = arith.subf %100, %103 : vector<2x8x8xf32>
    %105 = math.exp %104 : vector<2x8x8xf32>
    %cst_37 = arith.constant dense<0.000000e+00> : vector<2x8xf32>
    %106 = vector.multi_reduction <add>, %105, %cst_37 [2] : vector<2x8x8xf32> to vector<2x8xf32>
    %107 = vector.shape_cast %106 : vector<2x8xf32> to vector<2x8x1xf32>
    %108 = tpu.reciprocal %107 {approx = true} : vector<2x8x1xf32> -> vector<2x8x1xf32>
    %109 = vector.broadcast %108 : vector<2x8x1xf32> to vector<2x8x8xf32>
    %110 = arith.mulf %105, %109 : vector<2x8x8xf32>
    "tpu.trace_start"() <{level = 10 : i32, message = "bqk,bkd->bqd"}> : () -> ()
    %cst_38 = arith.constant dense<0.000000e+00> : vector<2x8x8xf32>
    %111 = tpu.matmul %110, %99, %cst_38 {dimension_numbers = #tpu.dot_dimension_numbers<[2], [1], [1], [2], [0, 0, 0, 1, 1, 2], [0], [0]>} : vector<2x8x8xf32>, vector<2x8x8xf32>, vector<2x8x8xf32> -> vector<2x8x8xf32>
    "tpu.trace_stop"() : () -> ()
    %112 = vector.shape_cast %111 : vector<2x8x8xf32> to vector<16x8xf32>
    %c24 = arith.constant 24 : index
    %c0_39 = arith.constant 0 : index
    %113 = vector.load %arg6[%c24, %c0_39] : memref<32x32xf32, #tpu.memory_space<vmem>>, vector<8x32xf32>
    %cst_40 = arith.constant dense<0.000000e+00> : vector<16x32xf32>
    %114 = tpu.matmul %112, %113, %cst_40 {dimension_numbers = #tpu.dot_dimension_numbers<[1], [0], [0], [1], [0, 0, 1, 1], [], []>} : vector<16x8xf32>, vector<8x32xf32>, vector<16x32xf32> -> vector<16x32xf32>
    %115 = arith.addf %95, %114 : vector<16x32xf32>
    %c0_41 = arith.constant 0 : index
    %c0_42 = arith.constant 0 : index
    %116 = vector.load %arg8[%c0_41, %c0_42] : memref<1x32xf32, #tpu.memory_space<vmem>>, vector<1x32xf32>
    %c0_43 = arith.constant 0 : index
    %c0_44 = arith.constant 0 : index
    %117 = vector.load %arg9[%c0_43, %c0_44] : memref<1x32xf32, #tpu.memory_space<vmem>>, vector<1x32xf32>
    %cst_45 = arith.constant dense<0.000000e+00> : vector<16xf32>
    %118 = vector.multi_reduction <add>, %115, %cst_45 [1] : vector<16x32xf32> to vector<16xf32>
    %119 = vector.shape_cast %118 : vector<16xf32> to vector<16x1xf32>
    %cst_46 = arith.constant 3.200000e+01 : f32
    %120 = vector.broadcast %cst_46 : f32 to vector<16x1xf32>
    %121 = arith.divf %119, %120 : vector<16x1xf32>
    %122 = vector.broadcast %121 : vector<16x1xf32> to vector<16x32xf32>
    %123 = arith.subf %115, %122 : vector<16x32xf32>
    %124 = vector.broadcast %121 : vector<16x1xf32> to vector<16x32xf32>
    %125 = arith.subf %115, %124 : vector<16x32xf32>
    %126 = arith.mulf %123, %125 : vector<16x32xf32>
    %cst_47 = arith.constant dense<0.000000e+00> : vector<16xf32>
    %127 = vector.multi_reduction <add>, %126, %cst_47 [1] : vector<16x32xf32> to vector<16xf32>
    %128 = vector.shape_cast %127 : vector<16xf32> to vector<16x1xf32>
    %cst_48 = arith.constant 3.200000e+01 : f32
    %129 = vector.broadcast %cst_48 : f32 to vector<16x1xf32>
    %130 = arith.divf %128, %129 : vector<16x1xf32>
    %131 = vector.broadcast %121 : vector<16x1xf32> to vector<16x32xf32>
    %132 = arith.subf %115, %131 : vector<16x32xf32>
    %cst_49 = arith.constant 9.99999974E-6 : f32
    %133 = vector.broadcast %cst_49 : f32 to vector<16x1xf32>
    %134 = arith.addf %130, %133 : vector<16x1xf32>
    %135 = math.rsqrt %134 : vector<16x1xf32>
    %136 = vector.broadcast %135 : vector<16x1xf32> to vector<16x32xf32>
    %137 = arith.mulf %132, %136 : vector<16x32xf32>
    %138 = vector.broadcast %116 : vector<1x32xf32> to vector<16x32xf32>
    %139 = arith.mulf %137, %138 : vector<16x32xf32>
    %140 = vector.broadcast %117 : vector<1x32xf32> to vector<16x32xf32>
    %141 = arith.addf %139, %140 : vector<16x32xf32>
    %c0_50 = arith.constant 0 : index
    %c0_51 = arith.constant 0 : index
    %142 = vector.load %arg10[%c0_50, %c0_51] : memref<32x32xf32, #tpu.memory_space<vmem>>, vector<32x32xf32>
    %cst_52 = arith.constant dense<0.000000e+00> : vector<16x32xf32>
    %143 = tpu.matmul %141, %142, %cst_52 {dimension_numbers = #tpu.dot_dimension_numbers<[1], [0], [0], [1], [0, 0, 1, 1], [], []>} : vector<16x32xf32>, vector<32x32xf32>, vector<16x32xf32> -> vector<16x32xf32>
    %c0_53 = arith.constant 0 : index
    %c0_54 = arith.constant 0 : index
    %144 = vector.load %arg11[%c0_53, %c0_54] : memref<1x32xf32, #tpu.memory_space<vmem>>, vector<1x32xf32>
    %145 = vector.broadcast %144 : vector<1x32xf32> to vector<16x32xf32>
    %146 = arith.addf %143, %145 : vector<16x32xf32>
    %147 = arith.addf %146, %115 : vector<16x32xf32>
    %c0_55 = arith.constant 0 : index
    %c0_56 = arith.constant 0 : index
    %148 = vector.load %arg12[%c0_55, %c0_56] : memref<16x32xf32, #tpu.memory_space<vmem>>, vector<16x32xf32>
    tpu.vector_store %arg12[%c0_55, %c0_56], %147 {strides = array<i32>} : memref<16x32xf32, #tpu.memory_space<vmem>>, vector<16x32xf32>,
    return
  }
  func.func @transform_0(%arg0: i32) -> (i32, i32) {
    %c0_i32 = arith.constant 0 : i32
    %c0_i32_0 = arith.constant 0 : i32
    return %arg0, %c0_i32 : i32, i32
  }
  func.func @transform_1(%arg0: i32) -> (i32, i32) {
    %c0_i32 = arith.constant 0 : i32
    %c0_i32_0 = arith.constant 0 : i32
    %c0_i32_1 = arith.constant 0 : i32
    return %c0_i32, %c0_i32_0 : i32, i32
  }
  func.func @transform_2(%arg0: i32) -> (i32, i32) {
    %c0_i32 = arith.constant 0 : i32
    %c0_i32_0 = arith.constant 0 : i32
    %c0_i32_1 = arith.constant 0 : i32
    return %c0_i32, %c0_i32_0 : i32, i32
  }
  func.func @transform_3(%arg0: i32) -> (i32, i32) {
    %c0_i32 = arith.constant 0 : i32
    %c0_i32_0 = arith.constant 0 : i32
    %c0_i32_1 = arith.constant 0 : i32
    return %c0_i32, %c0_i32_0 : i32, i32
  }
  func.func @transform_4(%arg0: i32) -> (i32, i32) {
    %c0_i32 = arith.constant 0 : i32
    %c0_i32_0 = arith.constant 0 : i32
    %c0_i32_1 = arith.constant 0 : i32
    return %c0_i32, %c0_i32_0 : i32, i32
  }
  func.func @transform_5(%arg0: i32) -> (i32, i32) {
    %c0_i32 = arith.constant 0 : i32
    %c0_i32_0 = arith.constant 0 : i32
    %c0_i32_1 = arith.constant 0 : i32
    return %c0_i32, %c0_i32_0 : i32, i32
  }
  func.func @transform_6(%arg0: i32) -> (i32, i32) {
    %c0_i32 = arith.constant 0 : i32
    %c0_i32_0 = arith.constant 0 : i32
    %c0_i32_1 = arith.constant 0 : i32
    return %c0_i32, %c0_i32_0 : i32, i32
  }
  func.func @transform_7(%arg0: i32) -> (i32, i32) {
    %c0_i32 = arith.constant 0 : i32
    %c0_i32_0 = arith.constant 0 : i32
    %c0_i32_1 = arith.constant 0 : i32
    return %c0_i32, %c0_i32_0 : i32, i32
  }
  func.func @transform_8(%arg0: i32) -> (i32, i32) {
    %c0_i32 = arith.constant 0 : i32
    %c0_i32_0 = arith.constant 0 : i32
    %c0_i32_1 = arith.constant 0 : i32
    return %c0_i32, %c0_i32_0 : i32, i32
  }
  func.func @transform_9(%arg0: i32) -> (i32, i32) {
    %c0_i32 = arith.constant 0 : i32
    %c0_i32_0 = arith.constant 0 : i32
    %c0_i32_1 = arith.constant 0 : i32
    return %c0_i32, %c0_i32_0 : i32, i32
  }
  func.func @transform_10(%arg0: i32) -> (i32, i32) {
    %c0_i32 = arith.constant 0 : i32
    %c0_i32_0 = arith.constant 0 : i32
    %c0_i32_1 = arith.constant 0 : i32
    return %c0_i32, %c0_i32_0 : i32, i32
  }
  func.func @transform_11(%arg0: i32) -> (i32, i32) {
    %c0_i32 = arith.constant 0 : i32
    %c0_i32_0 = arith.constant 0 : i32
    return %arg0, %c0_i32 : i32, i32
  }
}

</mosaic_0001>

<llo_original>
// kernel: tpu_custom_call.1
$region0: #{tpu_custom_call.1}
  #allocation0 [shape = 'u32[]', space=smem, size = 0x4, offset = 0x4, fixed_abs, tag = 'smem constant byte address 0x4 - core index']
  #allocation1 [shape = 'u32[72,128]{1,0:T(1,128)}', space=vmem, size = 0x9000, scoped, tag = 'internal scratch']
  %s0 = inlined_call_operand.hbm [shape: f32[16,32], index: 0, kind: input, shape index: {}]
  %s1 = inlined_call_operand.hbm [shape: f32[1,32], index: 1, kind: input, shape index: {}]
  %s2 = inlined_call_operand.vmem [shape: f32[1,32], index: 2, kind: input, shape index: {}]
  %s3 = inlined_call_operand.hbm [shape: f32[32,96], index: 3, kind: input, shape index: {}]
  %s4 = inlined_call_operand.vmem [shape: f32[1,96], index: 4, kind: input, shape index: {}]
  %s5 = inlined_call_operand.hbm [shape: f32[32,32], index: 5, kind: input, shape index: {}]
  %s6 = inlined_call_operand.vmem [shape: f32[1,32], index: 6, kind: input, shape index: {}]
  %s7 = inlined_call_operand.vmem [shape: f32[1,32], index: 7, kind: input, shape index: {}]
  %s8 = inlined_call_operand.vmem [shape: f32[1,32], index: 8, kind: input, shape index: {}]
  %s9 = inlined_call_operand.hbm [shape: f32[32,32], index: 9, kind: input, shape index: {}]
  %s10 = inlined_call_operand.vmem [shape: f32[1,32], index: 10, kind: input, shape index: {}]
  %s11 = inlined_call_operand.hbm [shape: f32[16,32], index: 11, kind: output, shape index: {}]
  %s12 = sld [smem:[#allocation0]]
  $region74: #{tpu_custom_call.1} parent=0
    _
  %s14 = ssub.s32 1, %s12
  %s15 = scalar_select 0, %s14, %s12
  $region1: #{tpu_custom_call.1} parent=0
    #allocation2 [shape = 'u8[8192]{0}', space=vmem, size = 0x2000, scoped, tag = 'input window, operand 0, single buffered']
    #allocation3 [shape = 's32[1]{0}', space=sflag, size = 0x4, scoped, tag = 'scoped memory for tpu_custom_call.1']
    #allocation4 [shape = 's32[1]{0}', space=sflag, size = 0x4, scoped, tag = 'scoped memory for tpu_custom_call.1']
    #allocation5 [shape = 'u8[512]{0}', space=vmem, size = 0x400, scoped, tag = 'input window, operand 1, single buffered']
    #allocation6 [shape = 's32[1]{0}', space=sflag, size = 0x4, scoped, tag = 'scoped memory for tpu_custom_call.1']
    #allocation7 [shape = 'u8[16384]{0}', space=vmem, size = 0x4000, scoped, tag = 'input window, operand 3, single buffered']
    #allocation8 [shape = 'u8[16384]{0}', space=vmem, size = 0x4000, scoped, tag = 'input window, operand 5, single buffered']
    #allocation9 [shape = 's32[1]{0}', space=sflag, size = 0x4, scoped, tag = 'scoped memory for tpu_custom_call.1']
    #allocation10 [shape = 'u8[16384]{0}', space=vmem, size = 0x4000, scoped, tag = 'input window, operand 9, single buffered']
    #allocation11 [shape = 'u8[8192]{0}', space=vmem, size = 0x2000, scoped, tag = 'output window, operand 0, single buffered']
    %16 = vsyncpa [#allocation3], 0
    %17 = vsyncpa [#allocation6], 0
    %18 = vsyncpa [#allocation9], 0
    %19 = vsyncpa [#allocation4], 0
    // Predicated region
    $region2: #{tpu_custom_call.1} parent=1 // pred_check
      _
    $region3: #{tpu_custom_call.1} parent=1 // pred_check_branch
      %21 = sbr.rel (0) target = $region5
    $region4: #{tpu_custom_call.1} parent=1 // pred_region
      %23 = vsyncadd [#allocation3], 0
      %s24 = sshll.u32 %s0, 4
      %s25 = int_to_ptr.hbm [resolvable:$true] %s24
      %s26 = sshll.u32 [#allocation2], 4
      %s27 = int_to_ptr.vmem [resolvable:$true] %s26
      %32 = dma.hbm_to_vmem [thread:$0]  %s25, 256, %s27, [#allocation3], 128, 128, 8
    $region5: #{tpu_custom_call.1} parent=1 // pred_fallthru
      _
    // Predicated region
    $region6: #{tpu_custom_call.1} parent=1 // pred_check
      _
    $region7: #{tpu_custom_call.1} parent=1 // pred_check_branch
      %34 = sbr.rel (0) target = $region9
    $region8: #{tpu_custom_call.1} parent=1 // pred_region
      %36 = vsyncadd [#allocation6], 0
      %s38 = sshll.u32 %s1, 4
      %s39 = int_to_ptr.hbm [resolvable:$true] %s38
      %s40 = sshll.u32 [#allocation5], 4
      %s41 = int_to_ptr.vmem [resolvable:$true] %s40
      %43 = dma.hbm_to_vmem [thread:$0]  %s39, 16, %s41, [#allocation6]
    $region9: #{tpu_custom_call.1} parent=1 // pred_fallthru
      _
    // Predicated region
    $region10: #{tpu_custom_call.1} parent=1 // pred_check
      _
    $region11: #{tpu_custom_call.1} parent=1 // pred_check_branch
      %45 = sbr.rel (0) target = $region13
    $region12: #{tpu_custom_call.1} parent=1 // pred_region
      _
    $region13: #{tpu_custom_call.1} parent=1 // pred_fallthru
      _
    // Predicated region
    $region14: #{tpu_custom_call.1} parent=1 // pred_check
      _
    $region15: #{tpu_custom_call.1} parent=1 // pred_check_branch
      %47 = sbr.rel (0) target = $region17
    $region16: #{tpu_custom_call.1} parent=1 // pred_region
      %49 = vsyncadd [#allocation6], 0
      %s50 = sshll.u32 %s3, 4
      %s51 = int_to_ptr.hbm [resolvable:$true] %s50
      %s52 = sshll.u32 [#allocation7], 4
      %s53 = int_to_ptr.vmem [resolvable:$true] %s52
      %58 = dma.hbm_to_vmem [thread:$0]  %s51, 512, %s53, [#allocation6], 128, 128, 8
    $region17: #{tpu_custom_call.1} parent=1 // pred_fallthru
      _
    // Predicated region
    $region18: #{tpu_custom_call.1} parent=1 // pred_check
      _
    $region19: #{tpu_custom_call.1} parent=1 // pred_check_branch
      %60 = sbr.rel (0) target = $region21
    $region20: #{tpu_custom_call.1} parent=1 // pred_region
      _
    $region21: #{tpu_custom_call.1} parent=1 // pred_fallthru
      _
    // Predicated region
    $region22: #{tpu_custom_call.1} parent=1 // pred_check
      _
    $region23: #{tpu_custom_call.1} parent=1 // pred_check_branch
      %62 = sbr.rel (0) target = $region25
    $region24: #{tpu_custom_call.1} parent=1 // pred_region
      %64 = vsyncadd [#allocation9], 0
      %s65 = sshll.u32 %s5, 4
      %s66 = int_to_ptr.hbm [resolvable:$true] %s65
      %s67 = sshll.u32 [#allocation8], 4
      %s68 = int_to_ptr.vmem [resolvable:$true] %s67
      %73 = dma.hbm_to_vmem [thread:$0]  %s66, 512, %s68, [#allocation9], 128, 128, 8
    $region25: #{tpu_custom_call.1} parent=1 // pred_fallthru
      _
    // Predicated region
    $region26: #{tpu_custom_call.1} parent=1 // pred_check
      _
    $region27: #{tpu_custom_call.1} parent=1 // pred_check_branch
      %75 = sbr.rel (0) target = $region29
    $region28: #{tpu_custom_call.1} parent=1 // pred_region
      _
    $region29: #{tpu_custom_call.1} parent=1 // pred_fallthru
      _
    // Predicated region
    $region30: #{tpu_custom_call.1} parent=1 // pred_check
      _
    $region31: #{tpu_custom_call.1} parent=1 // pred_check_branch
      %77 = sbr.rel (0) target = $region33
    $region32: #{tpu_custom_call.1} parent=1 // pred_region
      _
    $region33: #{tpu_custom_call.1} parent=1 // pred_fallthru
      _
    // Predicated region
    $region34: #{tpu_custom_call.1} parent=1 // pred_check
      _
    $region35: #{tpu_custom_call.1} parent=1 // pred_check_branch
      %79 = sbr.rel (0) target = $region37
    $region36: #{tpu_custom_call.1} parent=1 // pred_region
      _
    $region37: #{tpu_custom_call.1} parent=1 // pred_fallthru
      _
    // Predicated region
    $region38: #{tpu_custom_call.1} parent=1 // pred_check
      _
    $region39: #{tpu_custom_call.1} parent=1 // pred_check_branch
      %81 = sbr.rel (0) target = $region41
    $region40: #{tpu_custom_call.1} parent=1 // pred_region
      %83 = vsyncadd [#allocation9], 0
      %s84 = sshll.u32 %s9, 4
      %s85 = int_to_ptr.hbm [resolvable:$true] %s84
      %s86 = sshll.u32 [#allocation10], 4
      %s87 = int_to_ptr.vmem [resolvable:$true] %s86
      %92 = dma.hbm_to_vmem [thread:$0]  %s85, 512, %s87, [#allocation9], 128, 128, 8
    $region41: #{tpu_custom_call.1} parent=1 // pred_fallthru
      _
    // Predicated region
    $region42: #{tpu_custom_call.1} parent=1 // pred_check
      _
    $region43: #{tpu_custom_call.1} parent=1 // pred_check_branch
      %94 = sbr.rel (0) target = $region45
    $region44: #{tpu_custom_call.1} parent=1 // pred_region
      _
    $region45: #{tpu_custom_call.1} parent=1 // pred_fallthru
      _
    // Predicated region
    $region46: #{tpu_custom_call.1} parent=1 // pred_check
      _
    $region47: #{tpu_custom_call.1} parent=1 // pred_check_branch
      %96 = sbr.rel (0) target = $region49
    $region48: #{tpu_custom_call.1} parent=1 // pred_region
      %98 = dma.done [#allocation3], 256
    $region49: #{tpu_custom_call.1} parent=1 // pred_fallthru
      _
    // Predicated region
    $region50: #{tpu_custom_call.1} parent=1 // pred_check
      _
    $region51: #{tpu_custom_call.1} parent=1 // pred_check_branch
      %100 = sbr.rel (0) target = $region53
    $region52: #{tpu_custom_call.1} parent=1 // pred_region
      %102 = dma.done [#allocation6], 16
    $region53: #{tpu_custom_call.1} parent=1 // pred_fallthru
      _
    // Predicated region
    $region54: #{tpu_custom_call.1} parent=1 // pred_check
      _
    $region55: #{tpu_custom_call.1} parent=1 // pred_check_branch
      %104 = sbr.rel (0) target = $region57
    $region56: #{tpu_custom_call.1} parent=1 // pred_region
      %106 = dma.done [#allocation6], 512
    $region57: #{tpu_custom_call.1} parent=1 // pred_fallthru
      _
    // Predicated region
    $region58: #{tpu_custom_call.1} parent=1 // pred_check
      _
    $region59: #{tpu_custom_call.1} parent=1 // pred_check_branch
      %108 = sbr.rel (0) target = $region61
    $region60: #{tpu_custom_call.1} parent=1 // pred_region
      %110 = dma.done [#allocation9], 512
    $region61: #{tpu_custom_call.1} parent=1 // pred_fallthru
      _
    // Predicated region
    $region62: #{tpu_custom_call.1} parent=1 // pred_check
      _
    $region63: #{tpu_custom_call.1} parent=1 // pred_check_branch
      %112 = sbr.rel (0) target = $region65
    $region64: #{tpu_custom_call.1} parent=1 // pred_region
      %114 = dma.done [#allocation9], 512
    $region65: #{tpu_custom_call.1} parent=1 // pred_fallthru
      _
    %v115 = vld [vmem:[#allocation2] sm:$0xff]
    %v116 = vld [vmem:[#allocation2 + $0x8] sm:$0xff]
    %v117 = vld [vmem:[#allocation5] sm:$0x1]
    %v118 = vld [vmem:[%s2] sm:$0x1]
    %vm119 = vcmask 261120
    %v120 = vsel %vm119, %v115, 0.0
    %121 = vadd.xlane.f32.xlu0 %v120
    %v122 = vpop.xlane.xlu0 %121
    %v123 = vsel %vm119, %v116, 0.0
    %124 = vadd.xlane.f32.xlu0 %v123
    %v125 = vpop.xlane.xlu0 %124
    %v126 = vrcp.pop 32.0
    %v127 = vmul.f32 32.0, %v126
    %v128 = vsub.f32 1.0, %v127
    %v129 = vmul.f32 %v126, %v128
    %v130 = vadd.f32 %v126, %v129
    %vm131 = vweird.f32 %v126
    %v132 = vsel %vm131, %v126, %v130
    %v133 = vmul.f32 %v122, %v132
    %v134 = vmul.f32 %v125, %v132
    %v135 = vsub.f32 %v115, %v133
    %v136 = vsub.f32 %v116, %v134
    %v137 = vmul.f32 %v135, %v135
    %v138 = vmul.f32 %v136, %v136
    %v139 = vsel %vm119, %v137, 0.0
    %140 = vadd.xlane.f32.xlu0 %v139
    %v141 = vpop.xlane.xlu0 %140
    %v142 = vsel %vm119, %v138, 0.0
    %143 = vadd.xlane.f32.xlu0 %v142
    %v144 = vpop.xlane.xlu0 %143
    %v145 = vmul.f32 %v141, %v132
    %v146 = vmul.f32 %v144, %v132
    %v147 = vadd.f32 %v145, 1e-05
    %v148 = vadd.f32 %v146, 1e-05
    %v149 = vrsqrt.pop %v147
    %v150 = vmul.f32 %v149, %v147
    %v151 = vmul.f32 %v150, %v149
    %v152 = vmul.f32 0.5, %v151
    %v153 = vsub.f32 1.5, %v152
    %v154 = vmul.f32 %v149, %v153
    %vm155 = vweird.f32 %v147
    %vm156 = vweird.f32 %v149
    %vm157 = vmor %vm155, %vm156
    %v158 = vsel %vm157, %v149, %v154
    %v159 = vrsqrt.pop %v148
    %v160 = vmul.f32 %v159, %v148
    %v161 = vmul.f32 %v160, %v159
    %v162 = vmul.f32 0.5, %v161
    %v163 = vsub.f32 1.5, %v162
    %v164 = vmul.f32 %v159, %v163
    %vm165 = vweird.f32 %v148
    %vm166 = vweird.f32 %v159
    %vm167 = vmor %vm165, %vm166
    %v168 = vsel %vm167, %v159, %v164
    %v169 = vmul.f32 %v135, %v158
    %v170 = vmul.f32 %v136, %v168
    %v172 = vperm.slane %v117, 0
    %v174 = vmul.f32 %v169, %v172
    %v175 = vmul.f32 %v170, %v172
    %v177 = vperm.slane %v118, 0
    %v179 = vadd.f32 %v174, %v177
    %v180 = vadd.f32 %v175, %v177
    %v181 = vld [vmem:[#allocation7] sm:$0xff]
    %v182 = vld [vmem:[#allocation7 + $0x8] sm:$0xff]
    %v183 = vld [vmem:[#allocation7 + $0x10] sm:$0xff]
    %v184 = vld [vmem:[#allocation7 + $0x18] sm:$0xff]
    %v185 = vld [vmem:[%s4] sm:$0x1]
    %v187 = vperm.slane %v185, 0
    %v190 = vsel %vm119, %v179, 0
    %v193 = vsel %vm119, %v180, 0
    %195 = vmatpush.msra.mxu0 0.0
    %196 = vmatpush.msra.mxu0 0.0
    %197 = vmatpush.msra.mxu0 0.0
    %198 = vmatpush.msra.mxu0 0.0
    %199 = vmatpush.msra.mxu0 0.0
    %200 = vmatpush.msra.mxu0 0.0
    %201 = vmatpush.msra.mxu0 0.0
    %202 = vmatpush.msra.mxu0 0.0
    %203 = vmatpush.msra.mxu0 0.0
    %204 = vmatpush.msra.mxu0 0.0
    %205 = vmatpush.msra.mxu0 0.0
    %206 = vmatpush.msra.mxu0 0.0
    %207 = vmatpush.msra.mxu0 %v184
    %208 = vmatpush.msra.mxu0 %v183
    %209 = vmatpush.msra.mxu0 %v182
    %210 = vmatpush.msra.mxu0 %v181
    %211 = vmatmul.f32.gmra.mxu0 %v190
    %v212 = vpop.f32.mrf.mxu0
    %v213 = vadd.f32 %v187, %v212
    %214 = vmatmul.f32.gmra.mxu0 %v193
    %v215 = vpop.f32.mrf.mxu0
    %v216 = vadd.f32 %v187, %v215
    %217 = vdwg.mxu0
    %v218 = vld [vmem:[%s6] sm:$0x1]
    %v220 = vperm.slane %v218, 0
    %v222 = vadd.f32 %v115, %v220
    %v223 = vadd.f32 %v116, %v220
    %225 = vrot.lane.b32.xlu0 %v213, 120
    %v226 = vpop.permute.xlu0 %225
    %vm227 = vcmask 64512
    %v228 = vsel %vm227, %v213, 0
    %v230 = vsel %vm227, %v226, 0
    %232 = vmatpush.xpose.msra.mxu0 0.0
    %233 = vmatpush.xpose.msra.mxu0 0.0
    %234 = vmatpush.xpose.msra.mxu0 0.0
    %235 = vmatpush.xpose.msra.mxu0 0.0
    %236 = vmatpush.xpose.msra.mxu0 0.0
    %237 = vmatpush.xpose.msra.mxu0 0.0
    %238 = vmatpush.xpose.msra.mxu0 0.0
    %239 = vmatpush.xpose.msra.mxu0 0.0
    %240 = vmatpush.xpose.msra.mxu0 0.0
    %241 = vmatpush.xpose.msra.mxu0 0.0
    %242 = vmatpush.xpose.msra.mxu0 0.0
    %243 = vmatpush.xpose.msra.mxu0 0.0
    %244 = vmatpush.xpose.msra.mxu0 0.0
    %245 = vmatpush.xpose.msra.mxu0 0.0
    %246 = vmatpush.xpose.msra.mxu0 0.0
    %247 = vmatpush.xpose.msra.mxu0 %v230
    %248 = vmatmul.f32.gmra.mxu0 %v228
    %v249 = vpop.f32.mrf.mxu0
    %v250 = vadd.f32 0.0, %v249
    %251 = vdwg.mxu0
    %253 = vrot.lane.b32.xlu0 %v216, 120
    %v254 = vpop.permute.xlu0 %253
    %v255 = vsel %vm227, %v216, 0
    %v257 = vsel %vm227, %v254, 0
    %259 = vmatpush.xpose.msra.mxu0 0.0
    %260 = vmatpush.xpose.msra.mxu0 0.0
    %261 = vmatpush.xpose.msra.mxu0 0.0
    %262 = vmatpush.xpose.msra.mxu0 0.0
    %263 = vmatpush.xpose.msra.mxu0 0.0
    %264 = vmatpush.xpose.msra.mxu0 0.0
    %265 = vmatpush.xpose.msra.mxu0 0.0
    %266 = vmatpush.xpose.msra.mxu0 0.0
    %267 = vmatpush.xpose.msra.mxu0 0.0
    %268 = vmatpush.xpose.msra.mxu0 0.0
    %269 = vmatpush.xpose.msra.mxu0 0.0
    %270 = vmatpush.xpose.msra.mxu0 0.0
    %271 = vmatpush.xpose.msra.mxu0 0.0
    %272 = vmatpush.xpose.msra.mxu0 0.0
    %273 = vmatpush.xpose.msra.mxu0 0.0
    %274 = vmatpush.xpose.msra.mxu0 %v257
    %275 = vmatmul.f32.gmra.mxu0 %v255
    %v276 = vpop.f32.mrf.mxu0
    %v277 = vadd.f32 0.0, %v276
    %278 = vdwg.mxu0
    %v279 = vsel %vm227, %v250, -inf
    %280 = vmax.xlane.f32.xlu0 %v279
    %v281 = vpop.xlane.xlu0 %280
    %v282 = vsel %vm227, %v277, -inf
    %283 = vmax.xlane.f32.xlu0 %v282
    %v284 = vpop.xlane.xlu0 %283
    %v285 = vsub.f32 %v250, %v281
    %v286 = vsub.f32 %v277, %v284
    %v287 = vmul.f32 %v285, 1.442695
    %v288 = vpow.pop %v287
    %v289 = vmul.f32 %v286, 1.442695
    %v290 = vpow.pop %v289
    %v291 = vsel %vm227, %v288, 0.0
    %292 = vadd.xlane.f32.xlu0 %v291
    %v293 = vpop.xlane.xlu0 %292
    %v294 = vsel %vm227, %v290, 0.0
    %295 = vadd.xlane.f32.xlu0 %v294
    %v296 = vpop.xlane.xlu0 %295
    %v297 = vrcp.pop %v293
    %v298 = vrcp.pop %v296
    %v299 = vmul.f32 %v288, %v297
    %v300 = vmul.f32 %v290, %v298
    %301 = vrot.lane.b32.xlu0 %v213, 112
    %v302 = vpop.permute.xlu0 %301
    %v305 = vsel %vm227, %v299, 0
    %307 = vmatpush.msra.mxu0 0.0
    %308 = vmatpush.msra.mxu0 0.0
    %309 = vmatpush.msra.mxu0 0.0
    %310 = vmatpush.msra.mxu0 0.0
    %311 = vmatpush.msra.mxu0 0.0
    %312 = vmatpush.msra.mxu0 0.0
    %313 = vmatpush.msra.mxu0 0.0
    %314 = vmatpush.msra.mxu0 0.0
    %315 = vmatpush.msra.mxu0 0.0
    %316 = vmatpush.msra.mxu0 0.0
    %317 = vmatpush.msra.mxu0 0.0
    %318 = vmatpush.msra.mxu0 0.0
    %319 = vmatpush.msra.mxu0 0.0
    %320 = vmatpush.msra.mxu0 0.0
    %321 = vmatpush.msra.mxu0 0.0
    %322 = vmatpush.msra.mxu0 %v302
    %323 = vmatmul.f32.gmra.mxu0 %v305
    %v324 = vpop.f32.mrf.mxu0
    %v325 = vadd.f32 0.0, %v324
    %326 = vdwg.mxu0
    %327 = vrot.lane.b32.xlu0 %v216, 112
    %v328 = vpop.permute.xlu0 %327
    %v331 = vsel %vm227, %v300, 0
    %333 = vmatpush.msra.mxu0 0.0
    %334 = vmatpush.msra.mxu0 0.0
    %335 = vmatpush.msra.mxu0 0.0
    %336 = vmatpush.msra.mxu0 0.0
    %337 = vmatpush.msra.mxu0 0.0
    %338 = vmatpush.msra.mxu0 0.0
    %339 = vmatpush.msra.mxu0 0.0
    %340 = vmatpush.msra.mxu0 0.0
    %341 = vmatpush.msra.mxu0 0.0
    %342 = vmatpush.msra.mxu0 0.0
    %343 = vmatpush.msra.mxu0 0.0
    %344 = vmatpush.msra.mxu0 0.0
    %345 = vmatpush.msra.mxu0 0.0
    %346 = vmatpush.msra.mxu0 0.0
    %347 = vmatpush.msra.mxu0 0.0
    %348 = vmatpush.msra.mxu0 %v328
    %349 = vmatmul.f32.gmra.mxu0 %v331
    %v350 = vpop.f32.mrf.mxu0
    %v351 = vadd.f32 0.0, %v350
    %352 = vdwg.mxu0
    %v353 = vld [vmem:[#allocation8] sm:$0xff]
    %v355 = vsel %vm227, %v325, 0
    %v358 = vsel %vm227, %v351, 0
    %360 = vmatpush.msra.mxu0 0.0
    %361 = vmatpush.msra.mxu0 0.0
    %362 = vmatpush.msra.mxu0 0.0
    %363 = vmatpush.msra.mxu0 0.0
    %364 = vmatpush.msra.mxu0 0.0
    %365 = vmatpush.msra.mxu0 0.0
    %366 = vmatpush.msra.mxu0 0.0
    %367 = vmatpush.msra.mxu0 0.0
    %368 = vmatpush.msra.mxu0 0.0
    %369 = vmatpush.msra.mxu0 0.0
    %370 = vmatpush.msra.mxu0 0.0
    %371 = vmatpush.msra.mxu0 0.0
    %372 = vmatpush.msra.mxu0 0.0
    %373 = vmatpush.msra.mxu0 0.0
    %374 = vmatpush.msra.mxu0 0.0
    %375 = vmatpush.msra.mxu0 %v353
    %376 = vmatmul.f32.gmra.mxu0 %v355
    %v377 = vpop.f32.mrf.mxu0
    %v378 = vadd.f32 0.0, %v377
    %379 = vmatmul.f32.gmra.mxu0 %v358
    %v380 = vpop.f32.mrf.mxu0
    %v381 = vadd.f32 0.0, %v380
    %382 = vdwg.mxu0
    %v383 = vadd.f32 %v222, %v378
    %v384 = vadd.f32 %v223, %v381
    %385 = vrot.lane.b32.xlu0 %v213, 104
    %v386 = vpop.permute.xlu0 %385
    %387 = vrot.lane.b32.xlu0 %v213, 96
    %v388 = vpop.permute.xlu0 %387
    %v389 = vsel %vm227, %v386, 0
    %v391 = vsel %vm227, %v388, 0
    %393 = vmatpush.xpose.msra.mxu0 0.0
    %394 = vmatpush.xpose.msra.mxu0 0.0
    %395 = vmatpush.xpose.msra.mxu0 0.0
    %396 = vmatpush.xpose.msra.mxu0 0.0
    %397 = vmatpush.xpose.msra.mxu0 0.0
    %398 = vmatpush.xpose.msra.mxu0 0.0
    %399 = vmatpush.xpose.msra.mxu0 0.0
    %400 = vmatpush.xpose.msra.mxu0 0.0
    %401 = vmatpush.xpose.msra.mxu0 0.0
    %402 = vmatpush.xpose.msra.mxu0 0.0
    %403 = vmatpush.xpose.msra.mxu0 0.0
    %404 = vmatpush.xpose.msra.mxu0 0.0
    %405 = vmatpush.xpose.msra.mxu0 0.0
    %406 = vmatpush.xpose.msra.mxu0 0.0
    %407 = vmatpush.xpose.msra.mxu0 0.0
    %408 = vmatpush.xpose.msra.mxu0 %v391
    %409 = vmatmul.f32.gmra.mxu0 %v389
    %v410 = vpop.f32.mrf.mxu0
    %v411 = vadd.f32 0.0, %v410
    %412 = vdwg.mxu0
    %413 = vrot.lane.b32.xlu0 %v216, 104
    %v414 = vpop.permute.xlu0 %413
    %415 = vrot.lane.b32.xlu0 %v216, 96
    %v416 = vpop.permute.xlu0 %415
    %v417 = vsel %vm227, %v414, 0
    %v419 = vsel %vm227, %v416, 0
    %421 = vmatpush.xpose.msra.mxu0 0.0
    %422 = vmatpush.xpose.msra.mxu0 0.0
    %423 = vmatpush.xpose.msra.mxu0 0.0
    %424 = vmatpush.xpose.msra.mxu0 0.0
    %425 = vmatpush.xpose.msra.mxu0 0.0
    %426 = vmatpush.xpose.msra.mxu0 0.0
    %427 = vmatpush.xpose.msra.mxu0 0.0
    %428 = vmatpush.xpose.msra.mxu0 0.0
    %429 = vmatpush.xpose.msra.mxu0 0.0
    %430 = vmatpush.xpose.msra.mxu0 0.0
    %431 = vmatpush.xpose.msra.mxu0 0.0
    %432 = vmatpush.xpose.msra.mxu0 0.0
    %433 = vmatpush.xpose.msra.mxu0 0.0
    %434 = vmatpush.xpose.msra.mxu0 0.0
    %435 = vmatpush.xpose.msra.mxu0 0.0
    %436 = vmatpush.xpose.msra.mxu0 %v419
    %437 = vmatmul.f32.gmra.mxu0 %v417
    %v438 = vpop.f32.mrf.mxu0
    %v439 = vadd.f32 0.0, %v438
    %440 = vdwg.mxu0
    %v441 = vsel %vm227, %v411, -inf
    %442 = vmax.xlane.f32.xlu0 %v441
    %v443 = vpop.xlane.xlu0 %442
    %v444 = vsel %vm227, %v439, -inf
    %445 = vmax.xlane.f32.xlu0 %v444
    %v446 = vpop.xlane.xlu0 %445
    %v447 = vsub.f32 %v411, %v443
    %v448 = vsub.f32 %v439, %v446
    %v449 = vmul.f32 %v447, 1.442695
    %v450 = vpow.pop %v449
    %v451 = vmul.f32 %v448, 1.442695
    %v452 = vpow.pop %v451
    %v453 = vsel %vm227, %v450, 0.0
    %454 = vadd.xlane.f32.xlu0 %v453
    %v455 = vpop.xlane.xlu0 %454
    %v456 = vsel %vm227, %v452, 0.0
    %457 = vadd.xlane.f32.xlu0 %v456
    %v458 = vpop.xlane.xlu0 %457
    %v459 = vrcp.pop %v455
    %v460 = vrcp.pop %v458
    %v461 = vmul.f32 %v450, %v459
    %v462 = vmul.f32 %v452, %v460
    %463 = vrot.lane.b32.xlu0 %v213, 88
    %v464 = vpop.permute.xlu0 %463
    %v467 = vsel %vm227, %v461, 0
    %469 = vmatpush.msra.mxu0 0.0
    %470 = vmatpush.msra.mxu0 0.0
    %471 = vmatpush.msra.mxu0 0.0
    %472 = vmatpush.msra.mxu0 0.0
    %473 = vmatpush.msra.mxu0 0.0
    %474 = vmatpush.msra.mxu0 0.0
    %475 = vmatpush.msra.mxu0 0.0
    %476 = vmatpush.msra.mxu0 0.0
    %477 = vmatpush.msra.mxu0 0.0
    %478 = vmatpush.msra.mxu0 0.0
    %479 = vmatpush.msra.mxu0 0.0
    %480 = vmatpush.msra.mxu0 0.0
    %481 = vmatpush.msra.mxu0 0.0
    %482 = vmatpush.msra.mxu0 0.0
    %483 = vmatpush.msra.mxu0 0.0
    %484 = vmatpush.msra.mxu0 %v464
    %485 = vmatmul.f32.gmra.mxu0 %v467
    %v486 = vpop.f32.mrf.mxu0
    %v487 = vadd.f32 0.0, %v486
    %488 = vdwg.mxu0
    %489 = vrot.lane.b32.xlu0 %v216, 88
    %v490 = vpop.permute.xlu0 %489
    %v493 = vsel %vm227, %v462, 0
    %495 = vmatpush.msra.mxu0 0.0
    %496 = vmatpush.msra.mxu0 0.0
    %497 = vmatpush.msra.mxu0 0.0
    %498 = vmatpush.msra.mxu0 0.0
    %499 = vmatpush.msra.mxu0 0.0
    %500 = vmatpush.msra.mxu0 0.0
    %501 = vmatpush.msra.mxu0 0.0
    %502 = vmatpush.msra.mxu0 0.0
    %503 = vmatpush.msra.mxu0 0.0
    %504 = vmatpush.msra.mxu0 0.0
    %505 = vmatpush.msra.mxu0 0.0
    %506 = vmatpush.msra.mxu0 0.0
    %507 = vmatpush.msra.mxu0 0.0
    %508 = vmatpush.msra.mxu0 0.0
    %509 = vmatpush.msra.mxu0 0.0
    %510 = vmatpush.msra.mxu0 %v490
    %511 = vmatmul.f32.gmra.mxu0 %v493
    %v512 = vpop.f32.mrf.mxu0
    %v513 = vadd.f32 0.0, %v512
    %514 = vdwg.mxu0
    %v515 = vld [vmem:[#allocation8 + $0x8] sm:$0xff]
    %v517 = vsel %vm227, %v487, 0
    %v520 = vsel %vm227, %v513, 0
    %522 = vmatpush.msra.mxu0 0.0
    %523 = vmatpush.msra.mxu0 0.0
    %524 = vmatpush.msra.mxu0 0.0
    %525 = vmatpush.msra.mxu0 0.0
    %526 = vmatpush.msra.mxu0 0.0
    %527 = vmatpush.msra.mxu0 0.0
    %528 = vmatpush.msra.mxu0 0.0
    %529 = vmatpush.msra.mxu0 0.0
    %530 = vmatpush.msra.mxu0 0.0
    %531 = vmatpush.msra.mxu0 0.0
    %532 = vmatpush.msra.mxu0 0.0
    %533 = vmatpush.msra.mxu0 0.0
    %534 = vmatpush.msra.mxu0 0.0
    %535 = vmatpush.msra.mxu0 0.0
    %536 = vmatpush.msra.mxu0 0.0
    %537 = vmatpush.msra.mxu0 %v515
    %538 = vmatmul.f32.gmra.mxu0 %v517
    %v539 = vpop.f32.mrf.mxu0
    %v540 = vadd.f32 0.0, %v539
    %541 = vmatmul.f32.gmra.mxu0 %v520
    %v542 = vpop.f32.mrf.mxu0
    %v543 = vadd.f32 0.0, %v542
    %544 = vdwg.mxu0
    %v545 = vadd.f32 %v383, %v540
    %v546 = vadd.f32 %v384, %v543
    %547 = vrot.lane.b32.xlu0 %v213, 80
    %v548 = vpop.permute.xlu0 %547
    %549 = vrot.lane.b32.xlu0 %v213, 72
    %v550 = vpop.permute.xlu0 %549
    %v551 = vsel %vm227, %v548, 0
    %v553 = vsel %vm227, %v550, 0
    %555 = vmatpush.xpose.msra.mxu0 0.0
    %556 = vmatpush.xpose.msra.mxu0 0.0
    %557 = vmatpush.xpose.msra.mxu0 0.0
    %558 = vmatpush.xpose.msra.mxu0 0.0
    %559 = vmatpush.xpose.msra.mxu0 0.0
    %560 = vmatpush.xpose.msra.mxu0 0.0
    %561 = vmatpush.xpose.msra.mxu0 0.0
    %562 = vmatpush.xpose.msra.mxu0 0.0
    %563 = vmatpush.xpose.msra.mxu0 0.0
    %564 = vmatpush.xpose.msra.mxu0 0.0
    %565 = vmatpush.xpose.msra.mxu0 0.0
    %566 = vmatpush.xpose.msra.mxu0 0.0
    %567 = vmatpush.xpose.msra.mxu0 0.0
    %568 = vmatpush.xpose.msra.mxu0 0.0
    %569 = vmatpush.xpose.msra.mxu0 0.0
    %570 = vmatpush.xpose.msra.mxu0 %v553
    %571 = vmatmul.f32.gmra.mxu0 %v551
    %v572 = vpop.f32.mrf.mxu0
    %v573 = vadd.f32 0.0, %v572
    %574 = vdwg.mxu0
    %575 = vrot.lane.b32.xlu0 %v216, 80
    %v576 = vpop.permute.xlu0 %575
    %577 = vrot.lane.b32.xlu0 %v216, 72
    %v578 = vpop.permute.xlu0 %577
    %v579 = vsel %vm227, %v576, 0
    %v581 = vsel %vm227, %v578, 0
    %583 = vmatpush.xpose.msra.mxu0 0.0
    %584 = vmatpush.xpose.msra.mxu0 0.0
    %585 = vmatpush.xpose.msra.mxu0 0.0
    %586 = vmatpush.xpose.msra.mxu0 0.0
    %587 = vmatpush.xpose.msra.mxu0 0.0
    %588 = vmatpush.xpose.msra.mxu0 0.0
    %589 = vmatpush.xpose.msra.mxu0 0.0
    %590 = vmatpush.xpose.msra.mxu0 0.0
    %591 = vmatpush.xpose.msra.mxu0 0.0
    %592 = vmatpush.xpose.msra.mxu0 0.0
    %593 = vmatpush.xpose.msra.mxu0 0.0
    %594 = vmatpush.xpose.msra.mxu0 0.0
    %595 = vmatpush.xpose.msra.mxu0 0.0
    %596 = vmatpush.xpose.msra.mxu0 0.0
    %597 = vmatpush.xpose.msra.mxu0 0.0
    %598 = vmatpush.xpose.msra.mxu0 %v581
    %599 = vmatmul.f32.gmra.mxu0 %v579
    %v600 = vpop.f32.mrf.mxu0
    %v601 = vadd.f32 0.0, %v600
    %602 = vdwg.mxu0
    %v603 = vsel %vm227, %v573, -inf
    %604 = vmax.xlane.f32.xlu0 %v603
    %v605 = vpop.xlane.xlu0 %604
    %v606 = vsel %vm227, %v601, -inf
    %607 = vmax.xlane.f32.xlu0 %v606
    %v608 = vpop.xlane.xlu0 %607
    %v609 = vsub.f32 %v573, %v605
    %v610 = vsub.f32 %v601, %v608
    %v611 = vmul.f32 %v609, 1.442695
    %v612 = vpow.pop %v611
    %v613 = vmul.f32 %v610, 1.442695
    %v614 = vpow.pop %v613
    %v615 = vsel %vm227, %v612, 0.0
    %616 = vadd.xlane.f32.xlu0 %v615
    %v617 = vpop.xlane.xlu0 %616
    %v618 = vsel %vm227, %v614, 0.0
    %619 = vadd.xlane.f32.xlu0 %v618
    %v620 = vpop.xlane.xlu0 %619
    %v621 = vrcp.pop %v617
    %v622 = vrcp.pop %v620
    %v623 = vmul.f32 %v612, %v621
    %v624 = vmul.f32 %v614, %v622
    %625 = vrot.lane.b32.xlu0 %v213, 64
    %v626 = vpop.permute.xlu0 %625
    %v629 = vsel %vm227, %v623, 0
    %631 = vmatpush.msra.mxu0 0.0
    %632 = vmatpush.msra.mxu0 0.0
    %633 = vmatpush.msra.mxu0 0.0
    %634 = vmatpush.msra.mxu0 0.0
    %635 = vmatpush.msra.mxu0 0.0
    %636 = vmatpush.msra.mxu0 0.0
    %637 = vmatpush.msra.mxu0 0.0
    %638 = vmatpush.msra.mxu0 0.0
    %639 = vmatpush.msra.mxu0 0.0
    %640 = vmatpush.msra.mxu0 0.0
    %641 = vmatpush.msra.mxu0 0.0
    %642 = vmatpush.msra.mxu0 0.0
    %643 = vmatpush.msra.mxu0 0.0
    %644 = vmatpush.msra.mxu0 0.0
    %645 = vmatpush.msra.mxu0 0.0
    %646 = vmatpush.msra.mxu0 %v626
    %647 = vmatmul.f32.gmra.mxu0 %v629
    %v648 = vpop.f32.mrf.mxu0
    %v649 = vadd.f32 0.0, %v648
    %650 = vdwg.mxu0
    %651 = vrot.lane.b32.xlu0 %v216, 64
    %v652 = vpop.permute.xlu0 %651
    %v655 = vsel %vm227, %v624, 0
    %657 = vmatpush.msra.mxu0 0.0
    %658 = vmatpush.msra.mxu0 0.0
    %659 = vmatpush.msra.mxu0 0.0
    %660 = vmatpush.msra.mxu0 0.0
    %661 = vmatpush.msra.mxu0 0.0
    %662 = vmatpush.msra.mxu0 0.0
    %663 = vmatpush.msra.mxu0 0.0
    %664 = vmatpush.msra.mxu0 0.0
    %665 = vmatpush.msra.mxu0 0.0
    %666 = vmatpush.msra.mxu0 0.0
    %667 = vmatpush.msra.mxu0 0.0
    %668 = vmatpush.msra.mxu0 0.0
    %669 = vmatpush.msra.mxu0 0.0
    %670 = vmatpush.msra.mxu0 0.0
    %671 = vmatpush.msra.mxu0 0.0
    %672 = vmatpush.msra.mxu0 %v652
    %673 = vmatmul.f32.gmra.mxu0 %v655
    %v674 = vpop.f32.mrf.mxu0
    %v675 = vadd.f32 0.0, %v674
    %676 = vdwg.mxu0
    %v677 = vld [vmem:[#allocation8 + $0x10] sm:$0xff]
    %v679 = vsel %vm227, %v649, 0
    %v682 = vsel %vm227, %v675, 0
    %684 = vmatpush.msra.mxu0 0.0
    %685 = vmatpush.msra.mxu0 0.0
    %686 = vmatpush.msra.mxu0 0.0
    %687 = vmatpush.msra.mxu0 0.0
    %688 = vmatpush.msra.mxu0 0.0
    %689 = vmatpush.msra.mxu0 0.0
    %690 = vmatpush.msra.mxu0 0.0
    %691 = vmatpush.msra.mxu0 0.0
    %692 = vmatpush.msra.mxu0 0.0
    %693 = vmatpush.msra.mxu0 0.0
    %694 = vmatpush.msra.mxu0 0.0
    %695 = vmatpush.msra.mxu0 0.0
    %696 = vmatpush.msra.mxu0 0.0
    %697 = vmatpush.msra.mxu0 0.0
    %698 = vmatpush.msra.mxu0 0.0
    %699 = vmatpush.msra.mxu0 %v677
    %700 = vmatmul.f32.gmra.mxu0 %v679
    %v701 = vpop.f32.mrf.mxu0
    %v702 = vadd.f32 0.0, %v701
    %703 = vmatmul.f32.gmra.mxu0 %v682
    %v704 = vpop.f32.mrf.mxu0
    %v705 = vadd.f32 0.0, %v704
    %706 = vdwg.mxu0
    %v707 = vadd.f32 %v545, %v702
    %v708 = vadd.f32 %v546, %v705
    %709 = vrot.lane.b32.xlu0 %v213, 56
    %v710 = vpop.permute.xlu0 %709
    %711 = vrot.lane.b32.xlu0 %v213, 48
    %v712 = vpop.permute.xlu0 %711
    %v713 = vsel %vm227, %v710, 0
    %v715 = vsel %vm227, %v712, 0
    %717 = vmatpush.xpose.msra.mxu0 0.0
    %718 = vmatpush.xpose.msra.mxu0 0.0
    %719 = vmatpush.xpose.msra.mxu0 0.0
    %720 = vmatpush.xpose.msra.mxu0 0.0
    %721 = vmatpush.xpose.msra.mxu0 0.0
    %722 = vmatpush.xpose.msra.mxu0 0.0
    %723 = vmatpush.xpose.msra.mxu0 0.0
    %724 = vmatpush.xpose.msra.mxu0 0.0
    %725 = vmatpush.xpose.msra.mxu0 0.0
    %726 = vmatpush.xpose.msra.mxu0 0.0
    %727 = vmatpush.xpose.msra.mxu0 0.0
    %728 = vmatpush.xpose.msra.mxu0 0.0
    %729 = vmatpush.xpose.msra.mxu0 0.0
    %730 = vmatpush.xpose.msra.mxu0 0.0
    %731 = vmatpush.xpose.msra.mxu0 0.0
    %732 = vmatpush.xpose.msra.mxu0 %v715
    %733 = vmatmul.f32.gmra.mxu0 %v713
    %v734 = vpop.f32.mrf.mxu0
    %v735 = vadd.f32 0.0, %v734
    %736 = vdwg.mxu0
    %737 = vrot.lane.b32.xlu0 %v216, 56
    %v738 = vpop.permute.xlu0 %737
    %739 = vrot.lane.b32.xlu0 %v216, 48
    %v740 = vpop.permute.xlu0 %739
    %v741 = vsel %vm227, %v738, 0
    %v743 = vsel %vm227, %v740, 0
    %745 = vmatpush.xpose.msra.mxu0 0.0
    %746 = vmatpush.xpose.msra.mxu0 0.0
    %747 = vmatpush.xpose.msra.mxu0 0.0
    %748 = vmatpush.xpose.msra.mxu0 0.0
    %749 = vmatpush.xpose.msra.mxu0 0.0
    %750 = vmatpush.xpose.msra.mxu0 0.0
    %751 = vmatpush.xpose.msra.mxu0 0.0
    %752 = vmatpush.xpose.msra.mxu0 0.0
    %753 = vmatpush.xpose.msra.mxu0 0.0
    %754 = vmatpush.xpose.msra.mxu0 0.0
    %755 = vmatpush.xpose.msra.mxu0 0.0
    %756 = vmatpush.xpose.msra.mxu0 0.0
    %757 = vmatpush.xpose.msra.mxu0 0.0
    %758 = vmatpush.xpose.msra.mxu0 0.0
    %759 = vmatpush.xpose.msra.mxu0 0.0
    %760 = vmatpush.xpose.msra.mxu0 %v743
    %761 = vmatmul.f32.gmra.mxu0 %v741
    %v762 = vpop.f32.mrf.mxu0
    %v763 = vadd.f32 0.0, %v762
    %764 = vdwg.mxu0
    %v765 = vsel %vm227, %v735, -inf
    %766 = vmax.xlane.f32.xlu0 %v765
    %v767 = vpop.xlane.xlu0 %766
    %v768 = vsel %vm227, %v763, -inf
    %769 = vmax.xlane.f32.xlu0 %v768
    %v770 = vpop.xlane.xlu0 %769
    %v771 = vsub.f32 %v735, %v767
    %v772 = vsub.f32 %v763, %v770
    %v773 = vmul.f32 %v771, 1.442695
    %v774 = vpow.pop %v773
    %v775 = vmul.f32 %v772, 1.442695
    %v776 = vpow.pop %v775
    %v777 = vsel %vm227, %v774, 0.0
    %778 = vadd.xlane.f32.xlu0 %v777
    %v779 = vpop.xlane.xlu0 %778
    %v780 = vsel %vm227, %v776, 0.0
    %781 = vadd.xlane.f32.xlu0 %v780
    %v782 = vpop.xlane.xlu0 %781
    %v783 = vrcp.pop %v779
    %v784 = vrcp.pop %v782
    %v785 = vmul.f32 %v774, %v783
    %v786 = vmul.f32 %v776, %v784
    %787 = vrot.lane.b32.xlu0 %v213, 40
    %v788 = vpop.permute.xlu0 %787
    %v791 = vsel %vm227, %v785, 0
    %793 = vmatpush.msra.mxu0 0.0
    %794 = vmatpush.msra.mxu0 0.0
    %795 = vmatpush.msra.mxu0 0.0
    %796 = vmatpush.msra.mxu0 0.0
    %797 = vmatpush.msra.mxu0 0.0
    %798 = vmatpush.msra.mxu0 0.0
    %799 = vmatpush.msra.mxu0 0.0
    %800 = vmatpush.msra.mxu0 0.0
    %801 = vmatpush.msra.mxu0 0.0
    %802 = vmatpush.msra.mxu0 0.0
    %803 = vmatpush.msra.mxu0 0.0
    %804 = vmatpush.msra.mxu0 0.0
    %805 = vmatpush.msra.mxu0 0.0
    %806 = vmatpush.msra.mxu0 0.0
    %807 = vmatpush.msra.mxu0 0.0
    %808 = vmatpush.msra.mxu0 %v788
    %809 = vmatmul.f32.gmra.mxu0 %v791
    %v810 = vpop.f32.mrf.mxu0
    %v811 = vadd.f32 0.0, %v810
    %812 = vdwg.mxu0
    %813 = vrot.lane.b32.xlu0 %v216, 40
    %v814 = vpop.permute.xlu0 %813
    %v817 = vsel %vm227, %v786, 0
    %819 = vmatpush.msra.mxu0 0.0
    %820 = vmatpush.msra.mxu0 0.0
    %821 = vmatpush.msra.mxu0 0.0
    %822 = vmatpush.msra.mxu0 0.0
    %823 = vmatpush.msra.mxu0 0.0
    %824 = vmatpush.msra.mxu0 0.0
    %825 = vmatpush.msra.mxu0 0.0
    %826 = vmatpush.msra.mxu0 0.0
    %827 = vmatpush.msra.mxu0 0.0
    %828 = vmatpush.msra.mxu0 0.0
    %829 = vmatpush.msra.mxu0 0.0
    %830 = vmatpush.msra.mxu0 0.0
    %831 = vmatpush.msra.mxu0 0.0
    %832 = vmatpush.msra.mxu0 0.0
    %833 = vmatpush.msra.mxu0 0.0
    %834 = vmatpush.msra.mxu0 %v814
    %835 = vmatmul.f32.gmra.mxu0 %v817
    %v836 = vpop.f32.mrf.mxu0
    %v837 = vadd.f32 0.0, %v836
    %838 = vdwg.mxu0
    %v839 = vld [vmem:[#allocation8 + $0x18] sm:$0xff]
    %v841 = vsel %vm227, %v811, 0
    %v844 = vsel %vm227, %v837, 0
    %846 = vmatpush.msra.mxu0 0.0
    %847 = vmatpush.msra.mxu0 0.0
    %848 = vmatpush.msra.mxu0 0.0
    %849 = vmatpush.msra.mxu0 0.0
    %850 = vmatpush.msra.mxu0 0.0
    %851 = vmatpush.msra.mxu0 0.0
    %852 = vmatpush.msra.mxu0 0.0
    %853 = vmatpush.msra.mxu0 0.0
    %854 = vmatpush.msra.mxu0 0.0
    %855 = vmatpush.msra.mxu0 0.0
    %856 = vmatpush.msra.mxu0 0.0
    %857 = vmatpush.msra.mxu0 0.0
    %858 = vmatpush.msra.mxu0 0.0
    %859 = vmatpush.msra.mxu0 0.0
    %860 = vmatpush.msra.mxu0 0.0
    %861 = vmatpush.msra.mxu0 %v839
    %862 = vmatmul.f32.gmra.mxu0 %v841
    %v863 = vpop.f32.mrf.mxu0
    %v864 = vadd.f32 0.0, %v863
    %865 = vmatmul.f32.gmra.mxu0 %v844
    %v866 = vpop.f32.mrf.mxu0
    %v867 = vadd.f32 0.0, %v866
    %868 = vdwg.mxu0
    %v869 = vadd.f32 %v707, %v864
    %v870 = vadd.f32 %v708, %v867
    %v871 = vld [vmem:[%s7] sm:$0x1]
    %v872 = vld [vmem:[%s8] sm:$0x1]
    %v873 = vsel %vm119, %v869, 0.0
    %874 = vadd.xlane.f32.xlu0 %v873
    %v875 = vpop.xlane.xlu0 %874
    %v876 = vsel %vm119, %v870, 0.0
    %877 = vadd.xlane.f32.xlu0 %v876
    %v878 = vpop.xlane.xlu0 %877
    %v879 = vmul.f32 %v875, %v132
    %v880 = vmul.f32 %v878, %v132
    %v881 = vsub.f32 %v869, %v879
    %v882 = vsub.f32 %v870, %v880
    %v883 = vmul.f32 %v881, %v881
    %v884 = vmul.f32 %v882, %v882
    %v885 = vsel %vm119, %v883, 0.0
    %886 = vadd.xlane.f32.xlu0 %v885
    %v887 = vpop.xlane.xlu0 %886
    %v888 = vsel %vm119, %v884, 0.0
    %889 = vadd.xlane.f32.xlu0 %v888
    %v890 = vpop.xlane.xlu0 %889
    %v891 = vmul.f32 %v887, %v132
    %v892 = vmul.f32 %v890, %v132
    %v893 = vadd.f32 %v891, 1e-05
    %v894 = vadd.f32 %v892, 1e-05
    %v895 = vrsqrt.pop %v893
    %v896 = vmul.f32 %v895, %v893
    %v897 = vmul.f32 %v896, %v895
    %v898 = vmul.f32 0.5, %v897
    %v899 = vsub.f32 1.5, %v898
    %v900 = vmul.f32 %v895, %v899
    %vm901 = vweird.f32 %v893
    %vm902 = vweird.f32 %v895
    %vm903 = vmor %vm901, %vm902
    %v904 = vsel %vm903, %v895, %v900
    %v905 = vrsqrt.pop %v894
    %v906 = vmul.f32 %v905, %v894
    %v907 = vmul.f32 %v906, %v905
    %v908 = vmul.f32 0.5, %v907
    %v909 = vsub.f32 1.5, %v908
    %v910 = vmul.f32 %v905, %v909
    %vm911 = vweird.f32 %v894
    %vm912 = vweird.f32 %v905
    %vm913 = vmor %vm911, %vm912
    %v914 = vsel %vm913, %v905, %v910
    %v915 = vmul.f32 %v881, %v904
    %v916 = vmul.f32 %v882, %v914
    %v918 = vperm.slane %v871, 0
    %v920 = vmul.f32 %v915, %v918
    %v921 = vmul.f32 %v916, %v918
    %v923 = vperm.slane %v872, 0
    %v925 = vadd.f32 %v920, %v923
    %v926 = vadd.f32 %v921, %v923
    %v927 = vld [vmem:[#allocation10] sm:$0xff]
    %v928 = vld [vmem:[#allocation10 + $0x8] sm:$0xff]
    %v929 = vld [vmem:[#allocation10 + $0x10] sm:$0xff]
    %v930 = vld [vmem:[#allocation10 + $0x18] sm:$0xff]
    %v931 = vld [vmem:[%s10] sm:$0x1]
    %v933 = vperm.slane %v931, 0
    %v936 = vsel %vm119, %v925, 0
    %v939 = vsel %vm119, %v926, 0
    %941 = vmatpush.msra.mxu0 0.0
    %942 = vmatpush.msra.mxu0 0.0
    %943 = vmatpush.msra.mxu0 0.0
    %944 = vmatpush.msra.mxu0 0.0
    %945 = vmatpush.msra.mxu0 0.0
    %946 = vmatpush.msra.mxu0 0.0
    %947 = vmatpush.msra.mxu0 0.0
    %948 = vmatpush.msra.mxu0 0.0
    %949 = vmatpush.msra.mxu0 0.0
    %950 = vmatpush.msra.mxu0 0.0
    %951 = vmatpush.msra.mxu0 0.0
    %952 = vmatpush.msra.mxu0 0.0
    %953 = vmatpush.msra.mxu0 %v930
    %954 = vmatpush.msra.mxu0 %v929
    %955 = vmatpush.msra.mxu0 %v928
    %956 = vmatpush.msra.mxu0 %v927
    %957 = vmatmul.f32.gmra.mxu0 %v936
    %v958 = vpop.f32.mrf.mxu0
    %v959 = vadd.f32 %v933, %v958
    %960 = vmatmul.f32.gmra.mxu0 %v939
    %v961 = vpop.f32.mrf.mxu0
    %v962 = vadd.f32 %v933, %v961
    %963 = vdwg.mxu0
    %v964 = vadd.f32 %v959, %v869
    %v965 = vadd.f32 %v962, %v870
    %966 = vst.msk [vmem:[#allocation11] sm:$0xff] %vm119, %v964
    %967 = vst.msk [vmem:[#allocation11 + $0x8] sm:$0xff] %vm119, %v965
    // Predicated region
    $region66: #{tpu_custom_call.1} parent=1 // pred_check
      _
    $region67: #{tpu_custom_call.1} parent=1 // pred_check_branch
      %969 = sbr.rel (0) target = $region69
    $region68: #{tpu_custom_call.1} parent=1 // pred_region
      %971 = vsyncadd [#allocation4], 0
      %s972 = sshll.u32 [#allocation11], 4
      %s973 = int_to_ptr.vmem [resolvable:$true] %s972
      %s974 = sshll.u32 %s11, 4
      %s975 = int_to_ptr.hbm [resolvable:$true] %s974
      %980 = dma.vmem_to_hbm [thread:$0]  %s973, 256, %s975, [#allocation4], 128, 128, 8
    $region69: #{tpu_custom_call.1} parent=1 // pred_fallthru
      _
    // Predicated region
    $region70: #{tpu_custom_call.1} parent=1 // pred_check
      _
    $region71: #{tpu_custom_call.1} parent=1 // pred_check_branch
      %982 = sbr.rel (0) target = $region73
    $region72: #{tpu_custom_call.1} parent=1 // pred_region
      %984 = dma.done [#allocation4], 256
    $region73: #{tpu_custom_call.1} parent=1 // pred_fallthru
      _
    %985 = vsyncpa [#allocation3], 1
    %986 = vsyncpa [#allocation6], 1
    %987 = vsyncpa [#allocation9], 1
    %988 = vsyncpa [#allocation4], 1

</llo_original>
